<compile_context>
chip_gen: v7x
topology: tpu7x:2x2x1
jax: 0.10.0
libtpu: 0.0.40
codegen_flags: <defaults>
</compile_context>

<pallas_src>
import jax
import jax.numpy as jnp
from jax.experimental import pallas as pl
from jax.experimental.pallas import tpu as pltpu

_LANE = 128     # lane width: hidden dim padded to a multiple of this
_SUBLANE = 8    # sublane width: batch kept a multiple of this by the caller


def _round_up(n, m):
    return ((n + m - 1) // m) * m


def sentinel_kernel(x_ref, h_ref, c_ref, w_ref, out_ref):
    """x:(B,In) h:(B,Hp) cell:(B,Hp) w:(In+Hp,Hp) bf16 -> out:(B,Hp)."""
    in_size = x_ref.shape[-1]
    # bf16 MXU operands, f32 accumulation; static row-slices of w are free views.
    x = x_ref[...].astype(jnp.bfloat16)
    h = h_ref[...].astype(jnp.bfloat16)
    wx = w_ref[:in_size, :]          # (In, Hp)
    wh = w_ref[in_size:, :]          # (Hp, Hp)
    gate = jax.nn.sigmoid(
        jnp.dot(x, wx, preferred_element_type=jnp.float32)
        + jnp.dot(h, wh, preferred_element_type=jnp.float32))
    # Nonlinearity math stays f32 (EUP); single store, lane-dense.
    out_ref[...] = (gate * jnp.tanh(c_ref[...])).astype(out_ref.dtype)


def prepare_sentinel_weights(wx_t, wh_t):
    """Fuse + pad + pre-cast the weights once (reused across all decode steps).

    wx_t: (input_size, hidden)   (PyTorch weight pre-transposed)
    wh_t: (hidden, hidden)
    returns: bf16 (input_size + Hp, Hp) with Hp = round_up(hidden, 128).
             Wh rows are zero-padded to Hp so h can be kept in padded layout.
    """
    in_size, hidden = wx_t.shape
    hp = _round_up(hidden, _LANE)
    wx = jnp.pad(wx_t, ((0, 0), (0, hp - hidden)))                  # (In, Hp)
    wh = jnp.pad(wh_t, ((0, hp - hidden), (0, hp - hidden)))        # (Hp, Hp)
    return jnp.concatenate([wx, wh], axis=0).astype(jnp.bfloat16)   # (In+Hp, Hp)


def pad_state(a, hp):
    """Pad a (B, H) state tensor to the persistent (Bp, Hp) layout (done once)."""
    b, h = a.shape
    bp = _round_up(b, _SUBLANE)
    return jnp.pad(a, ((0, bp - b), (0, hp - h)))


def sentinel_forward(x_t, h_pad, cell_pad, w_fused):
    """x_t:(B,In) f32, h_pad/cell_pad:(B,Hp) f32 (padded layout kept by caller),
    w_fused:(In+Hp,Hp) bf16  ->  (B,Hp) f32 (padded columns are exactly 0)."""
    B, in_size = x_t.shape
    Bp, Hp = cell_pad.shape
    assert h_pad.shape == (Bp, Hp)
    assert B == Bp and Bp % _SUBLANE == 0, "caller keeps batch sublane-aligned"
    assert Hp % _LANE == 0
    assert w_fused.shape == (in_size + Hp, Hp), "weight K must be In + Hp"

    K = in_size + Hp
    cost = pl.CostEstimate(
        flops=2 * Bp * K * Hp,
        transcendentals=2 * Bp * Hp,                      # sigmoid + tanh
        bytes_accessed=(Bp * in_size + 3 * Bp * Hp) * 4 + K * Hp * 2,
    )

    vmem = pltpu.MemorySpace.VMEM
    return pl.pallas_call(
        sentinel_kernel,
        out_shape=jax.ShapeDtypeStruct((Bp, Hp), jnp.float32),
        # Whole arrays are tiny -> single invocation, full-array VMEM blocks;
        # output last dim Hp is a multiple of 128 (unmasked stores).
        in_specs=[
            pl.BlockSpec(memory_space=vmem),   # x_t
            pl.BlockSpec(memory_space=vmem),   # h (padded)
            pl.BlockSpec(memory_space=vmem),   # cell (padded)
            pl.BlockSpec(memory_space=vmem),   # fused [Wx; Wh] bf16 (padded)
        ],
        out_specs=pl.BlockSpec(memory_space=vmem),
        cost_estimate=cost,
    )(x_t, h_pad, cell_pad, w_fused)


def sentinel_ref(x_t, h_t_1, cell_t, wx_t, wh_t):
    gate = jax.nn.sigmoid(x_t @ wx_t + h_t_1 @ wh_t)
    return gate * jnp.tanh(cell_t)


if __name__ == "__main__":
    input_size = 32
    hidden_size = 32
    batch = 8
    hp = _round_up(hidden_size, _LANE)

    key = jax.random.PRNGKey(0)
    k_x, k_h, k_c, k_wx, k_wh = jax.random.split(key, 5)

    x_t = jax.random.normal(k_x, (batch, input_size), dtype=jnp.float32)
    h_t_1 = jax.random.normal(k_h, (batch, hidden_size), dtype=jnp.float32)
    cell_t = jax.random.normal(k_c, (batch, hidden_size), dtype=jnp.float32)

    # Deterministic param init, same scale as PyTorch nn.Linear default
    # (uniform in [-1/sqrt(fan_in), 1/sqrt(fan_in)]). PyTorch stores weights
    # as (out, in); we keep them pre-transposed to (in, out) for the kernel.
    bound_x = 1.0 / jnp.sqrt(jnp.float32(input_size))
    bound_h = 1.0 / jnp.sqrt(jnp.float32(hidden_size))
    wx_t = jax.random.uniform(
        k_wx, (input_size, hidden_size), jnp.float32, -bound_x, bound_x)
    wh_t = jax.random.uniform(
        k_wh, (hidden_size, hidden_size), jnp.float32, -bound_h, bound_h)

    # One-time (per decode sequence, not per step) prep: fused bf16 weight and
    # padded persistent state layout.
    w_fused = prepare_sentinel_weights(wx_t, wh_t)          # (In+Hp, Hp) bf16
    h_pad = pad_state(h_t_1, hp)                            # (B, Hp)
    cell_pad = pad_state(cell_t, hp)                        # (B, Hp)

    out_pad = sentinel_forward(x_t, h_pad, cell_pad, w_fused)
    out_pad = jax.block_until_ready(out_pad)

    ref = sentinel_ref(x_t, h_t_1, cell_t, wx_t, wh_t)
    assert out_pad.shape == (batch, hp)
    # bf16 matmul operands -> loosened tolerance vs f32 reference (expected).
    assert jnp.allclose(out_pad[:, :hidden_size], ref, atol=2e-2, rtol=2e-2), \
        "mismatch vs reference"
    # Padded columns stay exactly zero, so the padded layout is stable across steps.
    assert jnp.all(out_pad[:, hidden_size:] == 0.0)

    print("KERNEL_OK")
</pallas_src>

<mosaic_0001>
module attributes {stable_mosaic.version = 11 : i64} {
  func.func @sentinel_kernel(%arg0: memref<8x32xf32, #tpu.memory_space<vmem>>, %arg1: memref<8x128xf32, #tpu.memory_space<vmem>>, %arg2: memref<8x128xf32, #tpu.memory_space<vmem>>, %arg3: memref<160x128xbf16, #tpu.memory_space<vmem>>, %arg4: memref<8x128xf32, #tpu.memory_space<vmem>>) attributes {dimension_semantics = [], scalar_prefetch = 0 : i64, scratch_operands = 0 : i64, tpu.core_type = #tpu.core_type<tc>} {
    %c0 = arith.constant 0 : index
    %c0_0 = arith.constant 0 : index
    %0 = vector.load %arg0[%c0, %c0_0] : memref<8x32xf32, #tpu.memory_space<vmem>>, vector<8x32xf32>
    %1 = arith.truncf %0 : vector<8x32xf32> to vector<8x32xbf16>
    %c0_1 = arith.constant 0 : index
    %c0_2 = arith.constant 0 : index
    %2 = vector.load %arg1[%c0_1, %c0_2] : memref<8x128xf32, #tpu.memory_space<vmem>>, vector<8x128xf32>
    %3 = arith.truncf %2 : vector<8x128xf32> to vector<8x128xbf16>
    %c0_3 = arith.constant 0 : index
    %c0_4 = arith.constant 0 : index
    %4 = vector.load %arg3[%c0_3, %c0_4] : memref<160x128xbf16, #tpu.memory_space<vmem>>, vector<32x128xbf16>
    %c32 = arith.constant 32 : index
    %c0_5 = arith.constant 0 : index
    %5 = vector.load %arg3[%c32, %c0_5] : memref<160x128xbf16, #tpu.memory_space<vmem>>, vector<128x128xbf16>
    %cst = arith.constant dense<0.000000e+00> : vector<8x128xf32>
    %6 = tpu.matmul %1, %4, %cst {dimension_numbers = #tpu.dot_dimension_numbers<[1], [0], [0], [1], [0, 0, 1, 1], [], []>} : vector<8x32xbf16>, vector<32x128xbf16>, vector<8x128xf32> -> vector<8x128xf32>
    %cst_6 = arith.constant dense<0.000000e+00> : vector<8x128xf32>
    %7 = tpu.matmul %3, %5, %cst_6 {dimension_numbers = #tpu.dot_dimension_numbers<[1], [0], [0], [1], [0, 0, 1, 1], [], []>} : vector<8x128xbf16>, vector<128x128xbf16>, vector<8x128xf32> -> vector<8x128xf32>
    %8 = arith.addf %6, %7 : vector<8x128xf32>
    %9 = arith.negf %8 : vector<8x128xf32>
    %10 = math.exp %9 : vector<8x128xf32>
    %cst_7 = arith.constant 1.000000e+00 : f32
    %11 = vector.broadcast %cst_7 : f32 to vector<8x128xf32>
    %12 = arith.addf %11, %10 : vector<8x128xf32>
    %13 = arith.divf %11, %12 : vector<8x128xf32>
    %c0_8 = arith.constant 0 : index
    %c0_9 = arith.constant 0 : index
    %14 = vector.load %arg2[%c0_8, %c0_9] : memref<8x128xf32, #tpu.memory_space<vmem>>, vector<8x128xf32>
    %15 = math.tanh %14 : vector<8x128xf32>
    %16 = arith.mulf %13, %15 : vector<8x128xf32>
    %c0_10 = arith.constant 0 : index
    %c0_11 = arith.constant 0 : index
    %17 = vector.load %arg4[%c0_10, %c0_11] : memref<8x128xf32, #tpu.memory_space<vmem>>, vector<8x128xf32>
    tpu.vector_store %arg4[%c0_10, %c0_11], %16 {strides = array<i32>} : memref<8x128xf32, #tpu.memory_space<vmem>>, vector<8x128xf32>,
    return
  }
}

</mosaic_0001>

<llo_original>
// kernel: tpu_custom_call.1
$region0: #{tpu_custom_call.1}
  #allocation0 [shape = 'u32[]', space=smem, size = 0x4, offset = 0x4, fixed_abs, tag = 'smem constant byte address 0x4 - core index']
  #allocation1 [shape = 'u32[144,128]{1,0:T(1,128)}', space=vmem, size = 0x12000, scoped, tag = 'internal scratch']
  %s0 = inlined_call_operand.hbm [shape: f32[8,32], index: 0, kind: input, shape index: {}]
  %s1 = inlined_call_operand.hbm [shape: f32[8,128], index: 1, kind: input, shape index: {}]
  %s2 = inlined_call_operand.hbm [shape: f32[8,128], index: 2, kind: input, shape index: {}]
  %s3 = inlined_call_operand.hbm [shape: bf16[160,128], index: 3, kind: input, shape index: {}]
  %s4 = inlined_call_operand.hbm [shape: f32[8,128], index: 4, kind: output, shape index: {}]
  %s5 = sld [smem:[#allocation0]]
  $region42: #{tpu_custom_call.1} parent=0
    _
  %s7 = ssub.s32 1, %s5
  %s8 = scalar_select 0, %s7, %s5
  $region1: #{tpu_custom_call.1} parent=0
    #allocation2 [shape = 'u8[4096]{0}', space=vmem, size = 0x1000, scoped, tag = 'input window, operand 0, single buffered']
    #allocation3 [shape = 's32[1]{0}', space=sflag, size = 0x4, scoped, tag = 'scoped memory for tpu_custom_call.1']
    #allocation4 [shape = 's32[1]{0}', space=sflag, size = 0x4, scoped, tag = 'scoped memory for tpu_custom_call.1']
    #allocation5 [shape = 'u8[4096]{0}', space=vmem, size = 0x1000, scoped, tag = 'input window, operand 1, single buffered']
    #allocation6 [shape = 's32[1]{0}', space=sflag, size = 0x4, scoped, tag = 'scoped memory for tpu_custom_call.1']
    #allocation7 [shape = 'u8[4096]{0}', space=vmem, size = 0x1000, scoped, tag = 'input window, operand 2, single buffered']
    #allocation8 [shape = 'u8[40960]{0}', space=vmem, size = 0xa000, scoped, tag = 'input window, operand 3, single buffered']
    #allocation9 [shape = 's32[1]{0}', space=sflag, size = 0x4, scoped, tag = 'scoped memory for tpu_custom_call.1']
    #allocation10 [shape = 'u8[4096]{0}', space=vmem, size = 0x1000, scoped, tag = 'output window, operand 0, single buffered']
    %9 = vsyncpa [#allocation3], 0
    %10 = vsyncpa [#allocation6], 0
    %11 = vsyncpa [#allocation9], 0
    %12 = vsyncpa [#allocation4], 0
    // Predicated region
    $region2: #{tpu_custom_call.1} parent=1 // pred_check
      _
    $region3: #{tpu_custom_call.1} parent=1 // pred_check_branch
      %14 = sbr.rel (0) target = $region5
    $region4: #{tpu_custom_call.1} parent=1 // pred_region
      %s16 = ssub.s32 128, 128
      %17 = vsyncadd [#allocation3], %s16
      %s19 = sshll.u32 [#allocation2], 4
      %s20 = int_to_ptr.vmem [resolvable:$true] %s19
      %22 = dma.hbm_to_vmem [thread:$0]  %s0, 128, %s20, [#allocation3]
    $region5: #{tpu_custom_call.1} parent=1 // pred_fallthru
      _
    // Predicated region
    $region6: #{tpu_custom_call.1} parent=1 // pred_check
      _
    $region7: #{tpu_custom_call.1} parent=1 // pred_check_branch
      %24 = sbr.rel (0) target = $region9
    $region8: #{tpu_custom_call.1} parent=1 // pred_region
      %s26 = ssub.s32 128, 128
      %27 = vsyncadd [#allocation6], %s26
      %s29 = sshll.u32 [#allocation5], 4
      %s30 = int_to_ptr.vmem [resolvable:$true] %s29
      %32 = dma.hbm_to_vmem [thread:$0]  %s1, 128, %s30, [#allocation6]
    $region9: #{tpu_custom_call.1} parent=1 // pred_fallthru
      _
    // Predicated region
    $region10: #{tpu_custom_call.1} parent=1 // pred_check
      _
    $region11: #{tpu_custom_call.1} parent=1 // pred_check_branch
      %34 = sbr.rel (0) target = $region13
    $region12: #{tpu_custom_call.1} parent=1 // pred_region
      %s36 = ssub.s32 128, 128
      %37 = vsyncadd [#allocation6], %s36
      %s39 = sshll.u32 [#allocation7], 4
      %s40 = int_to_ptr.vmem [resolvable:$true] %s39
      %42 = dma.hbm_to_vmem [thread:$0]  %s2, 128, %s40, [#allocation6]
    $region13: #{tpu_custom_call.1} parent=1 // pred_fallthru
      _
    // Predicated region
    $region14: #{tpu_custom_call.1} parent=1 // pred_check
      _
    $region15: #{tpu_custom_call.1} parent=1 // pred_check_branch
      %44 = sbr.rel (0) target = $region17
    $region16: #{tpu_custom_call.1} parent=1 // pred_region
      %s46 = ssub.s32 1280, 1280
      %47 = vsyncadd [#allocation9], %s46
      %s48 = sshll.u32 [#allocation8], 4
      %s49 = int_to_ptr.vmem [resolvable:$true] %s48
      %54 = dma.hbm_to_vmem [thread:$0]  %s3, 1280, %s49, [#allocation9], 64, 64, 4
    $region17: #{tpu_custom_call.1} parent=1 // pred_fallthru
      _
    // Predicated region
    $region18: #{tpu_custom_call.1} parent=1 // pred_check
      _
    $region19: #{tpu_custom_call.1} parent=1 // pred_check_branch
      %56 = sbr.rel (0) target = $region21
    $region20: #{tpu_custom_call.1} parent=1 // pred_region
      %57 = dma.done [#allocation3], 128
    $region21: #{tpu_custom_call.1} parent=1 // pred_fallthru
      _
    // Predicated region
    $region22: #{tpu_custom_call.1} parent=1 // pred_check
      _
    $region23: #{tpu_custom_call.1} parent=1 // pred_check_branch
      %59 = sbr.rel (0) target = $region25
    $region24: #{tpu_custom_call.1} parent=1 // pred_region
      %60 = dma.done [#allocation6], 128
    $region25: #{tpu_custom_call.1} parent=1 // pred_fallthru
      _
    // Predicated region
    $region26: #{tpu_custom_call.1} parent=1 // pred_check
      _
    $region27: #{tpu_custom_call.1} parent=1 // pred_check_branch
      %62 = sbr.rel (0) target = $region29
    $region28: #{tpu_custom_call.1} parent=1 // pred_region
      %63 = dma.done [#allocation6], 128
    $region29: #{tpu_custom_call.1} parent=1 // pred_fallthru
      _
    // Predicated region
    $region30: #{tpu_custom_call.1} parent=1 // pred_check
      _
    $region31: #{tpu_custom_call.1} parent=1 // pred_check_branch
      %65 = sbr.rel (0) target = $region33
    $region32: #{tpu_custom_call.1} parent=1 // pred_region
      %66 = dma.done [#allocation9], 1280
    $region33: #{tpu_custom_call.1} parent=1 // pred_fallthru
      _
    %v68 = vld [vmem:[#allocation2] sm:$0xff]
    %v69 = vpack.c.bf16 %v68, %v68
    %v70 = vld [vmem:[#allocation5] sm:$0xff]
    %v71 = vpack.c.bf16 %v70, %v70
    %v72 = vld [vmem:[#allocation8] sm:$0xf]
    %v73 = vld [vmem:[#allocation8 + $0x4] sm:$0xf]
    %v74 = vld [vmem:[#allocation8 + $0x8] sm:$0xf]
    %v75 = vld [vmem:[#allocation8 + $0xc] sm:$0xf]
    %v76 = vld [vmem:[#allocation8 + $0x10] sm:$0xf]
    %v77 = vld [vmem:[#allocation8 + $0x14] sm:$0xf]
    %v78 = vld [vmem:[#allocation8 + $0x18] sm:$0xf]
    %v79 = vld [vmem:[#allocation8 + $0x1c] sm:$0xf]
    %v80 = vld [vmem:[#allocation8 + $0x20] sm:$0xf]
    %v81 = vld [vmem:[#allocation8 + $0x24] sm:$0xf]
    %v82 = vld [vmem:[#allocation8 + $0x28] sm:$0xf]
    %v83 = vld [vmem:[#allocation8 + $0x2c] sm:$0xf]
    %v84 = vld [vmem:[#allocation8 + $0x30] sm:$0xf]
    %v85 = vld [vmem:[#allocation8 + $0x34] sm:$0xf]
    %v86 = vld [vmem:[#allocation8 + $0x38] sm:$0xf]
    %v87 = vld [vmem:[#allocation8 + $0x3c] sm:$0xf]
    %v88 = vld [vmem:[#allocation8 + $0x40] sm:$0xf]
    %v89 = vld [vmem:[#allocation8 + $0x44] sm:$0xf]
    %v90 = vld [vmem:[#allocation8 + $0x48] sm:$0xf]
    %v91 = vld [vmem:[#allocation8 + $0x4c] sm:$0xf]
    %v108 = vunpack.c.l.b16 %v76
    %v109 = vunpack.c.l.b16 %v77
    %v110 = vunpack.c.l.b16 %v78
    %v111 = vunpack.c.l.b16 %v79
    %v112 = vunpack.c.l.b16 %v80
    %v113 = vunpack.c.l.b16 %v81
    %v114 = vunpack.c.l.b16 %v82
    %v115 = vunpack.c.l.b16 %v83
    %v116 = vunpack.c.l.b16 %v84
    %v117 = vunpack.c.l.b16 %v85
    %v118 = vunpack.c.l.b16 %v86
    %v119 = vunpack.c.l.b16 %v87
    %v120 = vunpack.c.l.b16 %v88
    %v121 = vunpack.c.l.b16 %v89
    %v122 = vunpack.c.l.b16 %v90
    %v123 = vunpack.c.l.b16 %v91
    %v124 = vpack.c.b16 %v109, %v108
    %v125 = vpack.c.b16 %v111, %v110
    %v126 = vpack.c.b16 %v113, %v112
    %v127 = vpack.c.b16 %v115, %v114
    %v128 = vpack.c.b16 %v117, %v116
    %v129 = vpack.c.b16 %v119, %v118
    %v130 = vpack.c.b16 %v121, %v120
    %v131 = vpack.c.b16 %v123, %v122
    %140 = vmatprep.subr.bf16.mxu0 0
    %141 = vmatpush1.bf16.msra.mxu0 %v124
    %142 = vmatprep.subr.bf16.mxu0 0
    %143 = vmatpush1.bf16.msra.mxu0 %v125
    %144 = vmatprep.subr.bf16.mxu0 0
    %145 = vmatpush1.bf16.msra.mxu0 %v126
    %146 = vmatprep.subr.bf16.mxu0 0
    %147 = vmatpush1.bf16.msra.mxu0 %v127
    %148 = vmatprep.subr.bf16.mxu0 0
    %149 = vmatpush1.bf16.msra.mxu0 %v128
    %150 = vmatprep.subr.bf16.mxu0 0
    %151 = vmatpush1.bf16.msra.mxu0 %v129
    %152 = vmatprep.subr.bf16.mxu0 0
    %153 = vmatpush1.bf16.msra.mxu0 %v130
    %154 = vmatprep.subr.bf16.mxu0 0
    %155 = vmatpush1.bf16.msra.mxu0 %v131
    %156 = vmatprep.subr.bf16.mxu0 0
    %157 = vmatpush1.bf16.msra.mxu0 0
    %158 = vmatprep.subr.bf16.mxu0 0
    %159 = vmatpush1.bf16.msra.mxu0 0
    %160 = vmatprep.subr.bf16.mxu0 0
    %161 = vmatpush1.bf16.msra.mxu0 0
    %162 = vmatprep.subr.bf16.mxu0 0
    %163 = vmatpush1.bf16.msra.mxu0 0
    %164 = vmatprep.subr.bf16.mxu0 0
    %165 = vmatpush1.bf16.msra.mxu0 0
    %166 = vmatprep.subr.bf16.mxu0 0
    %167 = vmatpush1.bf16.msra.mxu0 0
    %168 = vmatprep.subr.bf16.mxu0 0
    %169 = vmatpush1.bf16.msra.mxu0 0
    %170 = vmatprep.subr.bf16.mxu0 0
    %171 = vmatpush1.bf16.msra.mxu0 0
    %172 = vmatprep.mubr.bf16.mxu0 0
    %173 = vmatmul.mubr.bf16.gmra.mrb[0].mxu0 %v71
    %v174 = vpop.f32.mrb[0].mxu0
    %v175 = vadd.f32 0.0, %v174
    %v176 = vpop.f32.mrb[0].mxu0
    %v177 = vpop.f32.mrb[0].mxu0
    %v178 = vpop.f32.mrb[0].mxu0
    %179 = vdwg.mxu0
    %v184 = vunpack.c.l.b16 %v72
    %v185 = vunpack.c.l.b16 %v73
    %v186 = vunpack.c.l.b16 %v74
    %v187 = vunpack.c.l.b16 %v75
    %v188 = vpack.c.b16 %v185, %v184
    %v189 = vpack.c.b16 %v187, %v186
    %vm192 = vcmask 261120
    %v194 = vsel %vm192, %v69, 0
    %196 = vmatprep.subr.bf16.mxu0 0
    %197 = vmatpush1.bf16.msra.mxu0 %v188
    %198 = vmatprep.subr.bf16.mxu0 0
    %199 = vmatpush1.bf16.msra.mxu0 %v189
    %200 = vmatprep.subr.bf16.mxu0 0
    %201 = vmatpush1.bf16.msra.mxu0 0
    %202 = vmatprep.subr.bf16.mxu0 0
    %203 = vmatpush1.bf16.msra.mxu0 0
    %204 = vmatprep.subr.bf16.mxu0 0
    %205 = vmatpush1.bf16.msra.mxu0 0
    %206 = vmatprep.subr.bf16.mxu0 0
    %207 = vmatpush1.bf16.msra.mxu0 0
    %208 = vmatprep.subr.bf16.mxu0 0
    %209 = vmatpush1.bf16.msra.mxu0 0
    %210 = vmatprep.subr.bf16.mxu0 0
    %211 = vmatpush1.bf16.msra.mxu0 0
    %212 = vmatprep.subr.bf16.mxu0 0
    %213 = vmatpush1.bf16.msra.mxu0 0
    %214 = vmatprep.subr.bf16.mxu0 0
    %215 = vmatpush1.bf16.msra.mxu0 0
    %216 = vmatprep.subr.bf16.mxu0 0
    %217 = vmatpush1.bf16.msra.mxu0 0
    %218 = vmatprep.subr.bf16.mxu0 0
    %219 = vmatpush1.bf16.msra.mxu0 0
    %220 = vmatprep.subr.bf16.mxu0 0
    %221 = vmatpush1.bf16.msra.mxu0 0
    %222 = vmatprep.subr.bf16.mxu0 0
    %223 = vmatpush1.bf16.msra.mxu0 0
    %224 = vmatprep.subr.bf16.mxu0 0
    %225 = vmatpush1.bf16.msra.mxu0 0
    %226 = vmatprep.subr.bf16.mxu0 0
    %227 = vmatpush1.bf16.msra.mxu0 0
    %228 = vmatprep.mubr.bf16.mxu0 0
    %229 = vmatmul.mubr.bf16.gmra.mrb[0].mxu0 %v194
    %v230 = vpop.f32.mrb[0].mxu0
    %v231 = vadd.f32 %v175, %v230
    %v232 = vpop.f32.mrb[0].mxu0
    %v233 = vpop.f32.mrb[0].mxu0
    %v234 = vpop.f32.mrb[0].mxu0
    %235 = vdwg.mxu0
    %v236 = vxor.u32 %v231, 2147483648
    %v237 = vmul.f32 %v236, 1.442695
    %v238 = vpow.pop %v237
    %v239 = vadd.f32 %v238, 1.0
    %v240 = vrcp.pop %v239
    %v241 = vmul.f32 1.0, %v240
    %v242 = vld [vmem:[#allocation7] sm:$0xff]
    %v243 = vtanh.pop %v242
    %v244 = vmul.f32 %v241, %v243
    %245 = vst [vmem:[#allocation10] sm:$0xff] %v244
    // Predicated region
    $region34: #{tpu_custom_call.1} parent=1 // pred_check
      _
    $region35: #{tpu_custom_call.1} parent=1 // pred_check_branch
      %247 = sbr.rel (0) target = $region37
    $region36: #{tpu_custom_call.1} parent=1 // pred_region
      %s249 = ssub.s32 128, 128
      %250 = vsyncadd [#allocation4], %s249
      %s252 = sshll.u32 [#allocation10], 4
      %s253 = int_to_ptr.vmem [resolvable:$true] %s252
      %255 = dma.vmem_to_hbm [thread:$0]  %s253, 128, %s4, [#allocation4]
    $region37: #{tpu_custom_call.1} parent=1 // pred_fallthru
      _
    // Predicated region
    $region38: #{tpu_custom_call.1} parent=1 // pred_check
      _
    $region39: #{tpu_custom_call.1} parent=1 // pred_check_branch
      %257 = sbr.rel (0) target = $region41
    $region40: #{tpu_custom_call.1} parent=1 // pred_region
      %258 = dma.done [#allocation4], 128
    $region41: #{tpu_custom_call.1} parent=1 // pred_fallthru
      _
    %259 = vsyncpa [#allocation3], 1
    %260 = vsyncpa [#allocation6], 1
    %261 = vsyncpa [#allocation9], 1
    %262 = vsyncpa [#allocation4], 1

</llo_original>
